<compile_context>
chip_gen: v6e
topology: v6e:2x2x1
jax: 0.10.0
libtpu: 0.0.40
codegen_flags: <defaults>
</compile_context>

<pallas_src>
import functools

import jax
import jax.numpy as jnp
from jax.experimental import pallas as pl
from jax.experimental.pallas import tpu as pltpu


def cab_kernel(x1_ref, x2_ref, w1a_ref, w1b_ref, b1_ref, w2_ref, b2_ref, o_ref):
    # x1_ref: (C1, TL), x2_ref: (C2, TL) lane-dense slabs for this grid step.
    # conv1 (1x1) on the virtual concat == W1a @ x1 + W1b @ x2 + b1
    h = (
        jnp.dot(w1a_ref[...], x1_ref[...], preferred_element_type=jnp.float32)
        + jnp.dot(w1b_ref[...], x2_ref[...], preferred_element_type=jnp.float32)
        + b1_ref[...]
    )
    h = jnp.maximum(h, 0.0)                                   # ReLU
    # conv2 (1x1) == W2 @ h + b2
    y = jnp.dot(w2_ref[...], h, preferred_element_type=jnp.float32) + b2_ref[...]
    # sigmoid on the EUP (lax.logistic), keeps VALU slots free.
    o_ref[...] = jax.nn.sigmoid(y).astype(o_ref.dtype)


@functools.partial(jax.jit, static_argnames=("tile_m",))
def cab_forward(x1, x2, w1, b1, w2, b2, *, tile_m=8192):
    """x1: (N, C1, L), x2: (N, C2, L) float32; returns (N, Cout, L)."""
    n, c1, length = x1.shape
    _, c2, _ = x2.shape
    cout = w1.shape[0]

    # Fold batch into the length (lane) axis: (N, C, L) -> (C, N*L).
    # Minor dim is unchanged, so this is a cheap major-dim copy in XLA.
    m = n * length
    x1_2d = jnp.transpose(x1, (1, 0, 2)).reshape(c1, m)
    x2_2d = jnp.transpose(x2, (1, 0, 2)).reshape(c2, m)

    # Split conv1's weight so the concat never hits HBM.
    w1a = w1[:, :c1]
    w1b = w1[:, c1:]
    b1c = b1.reshape(cout, 1)
    b2c = b2.reshape(cout, 1)

    # Pick the lane tile: full extent for small problems, otherwise a
    # 128-aligned tile (pad the fused axis so the grid divides evenly).
    assert tile_m % 128 == 0, "tile_m must be a multiple of 128"
    if m <= tile_m:
        tl = m                       # block == full array dim: (8,128) rule OK
        m_pad = m
    else:
        tl = tile_m
        m_pad = ((m + tl - 1) // tl) * tl
        if m_pad != m:
            pad = m_pad - m
            x1_2d = jnp.pad(x1_2d, ((0, 0), (0, pad)))
            x2_2d = jnp.pad(x2_2d, ((0, 0), (0, pad)))
    grid_m = m_pad // tl

    y2d = pl.pallas_call(
        cab_kernel,
        out_shape=jax.ShapeDtypeStruct((cout, m_pad), x1.dtype),
        grid_spec=pltpu.PrefetchScalarGridSpec(
            num_scalar_prefetch=0,
            grid=(grid_m,),
            in_specs=[
                pl.BlockSpec((c1, tl), lambda i: (0, i)),
                pl.BlockSpec((c2, tl), lambda i: (0, i)),
                # Weights/biases: constant block index -> stay VMEM-resident.
                pl.BlockSpec((cout, c1), lambda i: (0, 0)),
                pl.BlockSpec((cout, c2), lambda i: (0, 0)),
                pl.BlockSpec((cout, 1), lambda i: (0, 0)),
                pl.BlockSpec((cout, cout), lambda i: (0, 0)),
                pl.BlockSpec((cout, 1), lambda i: (0, 0)),
            ],
            out_specs=pl.BlockSpec((cout, tl), lambda i: (0, i)),
        ),
        compiler_params=pltpu.CompilerParams(
            # Row-tile axis is independent -> shard across v7x's 2 TCs.
            dimension_semantics=("parallel",),
            # Explicit scoped limit; per-step buffers are only a few MiB so
            # this fits v5e/v6e (128 MiB) and v7x (64 MiB physical) alike.
            vmem_limit_bytes=32 * 1024 * 1024,
        ),
    )(x1_2d, x2_2d, w1a, w1b, b1c, w2, b2c)

    # Drop padding, unfold (Cout, N*L) -> (N, Cout, L).
    y2d = y2d[:, :m]
    return jnp.transpose(y2d.reshape(cout, n, length), (1, 0, 2))


def cab_reference(x1, x2, w1, b1, w2, b2):
    x = jnp.concatenate([x1, x2], axis=1)                     # (N, Cin, L)
    h = jnp.einsum("oc,ncl->nol", w1, x, precision="highest") + b1[None, :, None]
    h = jnp.maximum(h, 0.0)
    y = jnp.einsum("oc,ncl->nol", w2, h, precision="highest") + b2[None, :, None]
    return jax.nn.sigmoid(y)


def _make_params(key, cin, cout):
    k_w1, k_b1, k_w2, k_b2 = jax.random.split(key, 4)
    bound1 = 1.0 / (cin ** 0.5)
    bound2 = 1.0 / (cout ** 0.5)
    w1 = jax.random.uniform(k_w1, (cout, cin), jnp.float32, -bound1, bound1)
    b1 = jax.random.uniform(k_b1, (cout,), jnp.float32, -bound1, bound1)
    w2 = jax.random.uniform(k_w2, (cout, cout), jnp.float32, -bound2, bound2)
    b2 = jax.random.uniform(k_b2, (cout,), jnp.float32, -bound2, bound2)
    return w1, b1, w2, b2


if __name__ == "__main__":
    key = jax.random.PRNGKey(0)
    k_small, k_big = jax.random.split(key, 2)

    # ---- Test 1: small shapes (single full-extent block). ----
    N, C1, C2, L = 2, 4, 4, 16
    CIN, COUT = C1 + C2, 8
    k_x1, k_x2, k_p = jax.random.split(k_small, 3)
    x1 = jax.random.normal(k_x1, (N, C1, L), dtype=jnp.float32)
    x2 = jax.random.normal(k_x2, (N, C2, L), dtype=jnp.float32)
    w1, b1, w2, b2 = _make_params(k_p, CIN, COUT)

    out = jax.block_until_ready(cab_forward(x1, x2, w1, b1, w2, b2))
    ref = cab_reference(x1, x2, w1, b1, w2, b2)
    assert out.shape == (N, COUT, L), out.shape
    assert jnp.allclose(out, ref, atol=1e-5, rtol=1e-5), "mismatch vs reference (small)"

    # ---- Test 2: tiled + padded path (multi-step grid, parallel axis). ----
    N2, C1b, C2b, L2 = 2, 8, 8, 520          # M = 1040 -> 3 tiles of 512 (pad)
    CIN2, COUT2 = C1b + C2b, 16
    k_x1b, k_x2b, k_pb = jax.random.split(k_big, 3)
    x1b = jax.random.normal(k_x1b, (N2, C1b, L2), dtype=jnp.float32)
    x2b = jax.random.normal(k_x2b, (N2, C2b, L2), dtype=jnp.float32)
    w1b_, b1b_, w2b_, b2b_ = _make_params(k_pb, CIN2, COUT2)

    out2 = jax.block_until_ready(
        cab_forward(x1b, x2b, w1b_, b1b_, w2b_, b2b_, tile_m=512))
    ref2 = cab_reference(x1b, x2b, w1b_, b1b_, w2b_, b2b_)
    assert out2.shape == (N2, COUT2, L2), out2.shape
    assert jnp.allclose(out2, ref2, atol=1e-5, rtol=1e-5), "mismatch vs reference (tiled)"

    print("KERNEL_OK")
</pallas_src>

<mosaic_0001>
module attributes {stable_mosaic.version = 11 : i64} {
  func.func @cab_kernel(%arg0: i32, %arg1: memref<4x32xf32, #tpu.memory_space<vmem>>, %arg2: memref<4x32xf32, #tpu.memory_space<vmem>>, %arg3: memref<8x4xf32, #tpu.memory_space<vmem>>, %arg4: memref<8x4xf32, #tpu.memory_space<vmem>>, %arg5: memref<8x1xf32, #tpu.memory_space<vmem>>, %arg6: memref<8x8xf32, #tpu.memory_space<vmem>>, %arg7: memref<8x1xf32, #tpu.memory_space<vmem>>, %arg8: memref<8x32xf32, #tpu.memory_space<vmem>>) attributes {dimension_semantics = [#tpu.dimension_semantics<parallel>], iteration_bounds = array<i64: 1>, scalar_prefetch = 0 : i64, scratch_operands = 0 : i64, tpu.core_type = #tpu.core_type<tc>, window_params = [{transform_indices = @transform_0, window_bounds = array<i64: 4, 32>}, {transform_indices = @transform_1, window_bounds = array<i64: 4, 32>}, {pipeline_mode = #tpu.pipeline_mode<synchronous>, transform_indices = @transform_2, window_bounds = array<i64: 8, 4>}, {pipeline_mode = #tpu.pipeline_mode<synchronous>, transform_indices = @transform_3, window_bounds = array<i64: 8, 4>}, {pipeline_mode = #tpu.pipeline_mode<synchronous>, transform_indices = @transform_4, window_bounds = array<i64: 8, 1>}, {pipeline_mode = #tpu.pipeline_mode<synchronous>, transform_indices = @transform_5, window_bounds = array<i64: 8, 8>}, {pipeline_mode = #tpu.pipeline_mode<synchronous>, transform_indices = @transform_6, window_bounds = array<i64: 8, 1>}, {transform_indices = @transform_7, window_bounds = array<i64: 8, 32>}]} {
    %c0 = arith.constant 0 : index
    %c0_0 = arith.constant 0 : index
    %0 = vector.load %arg3[%c0, %c0_0] : memref<8x4xf32, #tpu.memory_space<vmem>>, vector<8x4xf32>
    %c0_1 = arith.constant 0 : index
    %c0_2 = arith.constant 0 : index
    %1 = vector.load %arg1[%c0_1, %c0_2] : memref<4x32xf32, #tpu.memory_space<vmem>>, vector<4x32xf32>
    %cst = arith.constant dense<0.000000e+00> : vector<8x32xf32>
    %2 = tpu.matmul %0, %1, %cst {dimension_numbers = #tpu.dot_dimension_numbers<[1], [0], [0], [1], [0, 0, 1, 1], [], []>} : vector<8x4xf32>, vector<4x32xf32>, vector<8x32xf32> -> vector<8x32xf32>
    %c0_3 = arith.constant 0 : index
    %c0_4 = arith.constant 0 : index
    %3 = vector.load %arg4[%c0_3, %c0_4] : memref<8x4xf32, #tpu.memory_space<vmem>>, vector<8x4xf32>
    %c0_5 = arith.constant 0 : index
    %c0_6 = arith.constant 0 : index
    %4 = vector.load %arg2[%c0_5, %c0_6] : memref<4x32xf32, #tpu.memory_space<vmem>>, vector<4x32xf32>
    %cst_7 = arith.constant dense<0.000000e+00> : vector<8x32xf32>
    %5 = tpu.matmul %3, %4, %cst_7 {dimension_numbers = #tpu.dot_dimension_numbers<[1], [0], [0], [1], [0, 0, 1, 1], [], []>} : vector<8x4xf32>, vector<4x32xf32>, vector<8x32xf32> -> vector<8x32xf32>
    %6 = arith.addf %2, %5 : vector<8x32xf32>
    %c0_8 = arith.constant 0 : index
    %c0_9 = arith.constant 0 : index
    %7 = vector.load %arg5[%c0_8, %c0_9] : memref<8x1xf32, #tpu.memory_space<vmem>>, vector<8x1xf32>
    %8 = vector.broadcast %7 : vector<8x1xf32> to vector<8x32xf32>
    %9 = arith.addf %6, %8 : vector<8x32xf32>
    %cst_10 = arith.constant 0.000000e+00 : f32
    %10 = vector.broadcast %cst_10 : f32 to vector<8x32xf32>
    %11 = arith.maximumf %9, %10 : vector<8x32xf32>
    %c0_11 = arith.constant 0 : index
    %c0_12 = arith.constant 0 : index
    %12 = vector.load %arg6[%c0_11, %c0_12] : memref<8x8xf32, #tpu.memory_space<vmem>>, vector<8x8xf32>
    %cst_13 = arith.constant dense<0.000000e+00> : vector<8x32xf32>
    %13 = tpu.matmul %12, %11, %cst_13 {dimension_numbers = #tpu.dot_dimension_numbers<[1], [0], [0], [1], [0, 0, 1, 1], [], []>} : vector<8x8xf32>, vector<8x32xf32>, vector<8x32xf32> -> vector<8x32xf32>
    %c0_14 = arith.constant 0 : index
    %c0_15 = arith.constant 0 : index
    %14 = vector.load %arg7[%c0_14, %c0_15] : memref<8x1xf32, #tpu.memory_space<vmem>>, vector<8x1xf32>
    %15 = vector.broadcast %14 : vector<8x1xf32> to vector<8x32xf32>
    %16 = arith.addf %13, %15 : vector<8x32xf32>
    %17 = arith.negf %16 : vector<8x32xf32>
    %18 = math.exp %17 : vector<8x32xf32>
    %cst_16 = arith.constant 1.000000e+00 : f32
    %19 = vector.broadcast %cst_16 : f32 to vector<8x32xf32>
    %20 = arith.addf %19, %18 : vector<8x32xf32>
    %21 = arith.divf %19, %20 : vector<8x32xf32>
    %c0_17 = arith.constant 0 : index
    %c0_18 = arith.constant 0 : index
    %22 = vector.load %arg8[%c0_17, %c0_18] : memref<8x32xf32, #tpu.memory_space<vmem>>, vector<8x32xf32>
    tpu.vector_store %arg8[%c0_17, %c0_18], %21 {strides = array<i32>} : memref<8x32xf32, #tpu.memory_space<vmem>>, vector<8x32xf32>,
    return
  }
  func.func @transform_0(%arg0: i32) -> (i32, i32) {
    %c0_i32 = arith.constant 0 : i32
    %c0_i32_0 = arith.constant 0 : i32
    return %c0_i32, %arg0 : i32, i32
  }
  func.func @transform_1(%arg0: i32) -> (i32, i32) {
    %c0_i32 = arith.constant 0 : i32
    %c0_i32_0 = arith.constant 0 : i32
    return %c0_i32, %arg0 : i32, i32
  }
  func.func @transform_2(%arg0: i32) -> (i32, i32) {
    %c0_i32 = arith.constant 0 : i32
    %c0_i32_0 = arith.constant 0 : i32
    %c0_i32_1 = arith.constant 0 : i32
    return %c0_i32, %c0_i32_0 : i32, i32
  }
  func.func @transform_3(%arg0: i32) -> (i32, i32) {
    %c0_i32 = arith.constant 0 : i32
    %c0_i32_0 = arith.constant 0 : i32
    %c0_i32_1 = arith.constant 0 : i32
    return %c0_i32, %c0_i32_0 : i32, i32
  }
  func.func @transform_4(%arg0: i32) -> (i32, i32) {
    %c0_i32 = arith.constant 0 : i32
    %c0_i32_0 = arith.constant 0 : i32
    %c0_i32_1 = arith.constant 0 : i32
    return %c0_i32, %c0_i32_0 : i32, i32
  }
  func.func @transform_5(%arg0: i32) -> (i32, i32) {
    %c0_i32 = arith.constant 0 : i32
    %c0_i32_0 = arith.constant 0 : i32
    %c0_i32_1 = arith.constant 0 : i32
    return %c0_i32, %c0_i32_0 : i32, i32
  }
  func.func @transform_6(%arg0: i32) -> (i32, i32) {
    %c0_i32 = arith.constant 0 : i32
    %c0_i32_0 = arith.constant 0 : i32
    %c0_i32_1 = arith.constant 0 : i32
    return %c0_i32, %c0_i32_0 : i32, i32
  }
  func.func @transform_7(%arg0: i32) -> (i32, i32) {
    %c0_i32 = arith.constant 0 : i32
    %c0_i32_0 = arith.constant 0 : i32
    return %c0_i32, %arg0 : i32, i32
  }
}

</mosaic_0001>

<llo_original>
// kernel: cab_forward.1
$region0: #{cab_forward.1}
  #allocation0 [shape = 'u32[]', space=smem, size = 0x4, offset = 0x4, fixed_abs, tag = 'smem constant byte address 0x4 - core index']
  #allocation1 [shape = 'u32[144,128]{1,0:T(1,128)}', space=vmem, size = 0x12000, scoped, tag = 'internal scratch']
  %s0 = inlined_call_operand.vmem [shape: f32[4,32], index: 0, kind: input, shape index: {}]
  %s1 = inlined_call_operand.vmem [shape: f32[4,32], index: 1, kind: input, shape index: {}]
  %s2 = inlined_call_operand.vmem [shape: f32[8,4], index: 2, kind: input, shape index: {}]
  %s3 = inlined_call_operand.vmem [shape: f32[8,4], index: 3, kind: input, shape index: {}]
  %s4 = inlined_call_operand.vmem [shape: f32[8,1], index: 4, kind: input, shape index: {}]
  %s5 = inlined_call_operand.vmem [shape: f32[8,8], index: 5, kind: input, shape index: {}]
  %s6 = inlined_call_operand.vmem [shape: f32[8,1], index: 6, kind: input, shape index: {}]
  %s7 = inlined_call_operand.vmem [shape: f32[8,32], index: 7, kind: output, shape index: {}]
  %s8 = sld [smem:[#allocation0]]
  $region38: #{cab_forward.1} parent=0
    _
  %s10 = ssub.s32 1, %s8
  %s11 = scalar_select 0, %s10, %s8
  // Predicated region
  $region2: #{cab_forward.1} parent=0 // pred_check
    _
  $region3: #{cab_forward.1} parent=0 // pred_check_branch
    %13 = sbr.rel (0) target = $region5
  $region4: #{cab_forward.1} parent=0 // pred_region
    _
  $region5: #{cab_forward.1} parent=0 // pred_fallthru
    _
  // Predicated region
  $region6: #{cab_forward.1} parent=0 // pred_check
    _
  $region7: #{cab_forward.1} parent=0 // pred_check_branch
    %15 = sbr.rel (0) target = $region9
  $region8: #{cab_forward.1} parent=0 // pred_region
    _
  $region9: #{cab_forward.1} parent=0 // pred_fallthru
    _
  // Predicated region
  $region10: #{cab_forward.1} parent=0 // pred_check
    _
  $region11: #{cab_forward.1} parent=0 // pred_check_branch
    %17 = sbr.rel (0) target = $region13
  $region12: #{cab_forward.1} parent=0 // pred_region
    _
  $region13: #{cab_forward.1} parent=0 // pred_fallthru
    _
  // Predicated region
  $region14: #{cab_forward.1} parent=0 // pred_check
    _
  $region15: #{cab_forward.1} parent=0 // pred_check_branch
    %19 = sbr.rel (0) target = $region17
  $region16: #{cab_forward.1} parent=0 // pred_region
    _
  $region17: #{cab_forward.1} parent=0 // pred_fallthru
    _
  // Predicated region
  $region18: #{cab_forward.1} parent=0 // pred_check
    _
  $region19: #{cab_forward.1} parent=0 // pred_check_branch
    %21 = sbr.rel (0) target = $region21
  $region20: #{cab_forward.1} parent=0 // pred_region
    _
  $region21: #{cab_forward.1} parent=0 // pred_fallthru
    _
  // Predicated region
  $region22: #{cab_forward.1} parent=0 // pred_check
    _
  $region23: #{cab_forward.1} parent=0 // pred_check_branch
    %23 = sbr.rel (0) target = $region25
  $region24: #{cab_forward.1} parent=0 // pred_region
    _
  $region25: #{cab_forward.1} parent=0 // pred_fallthru
    _
  // Predicated region
  $region26: #{cab_forward.1} parent=0 // pred_check
    _
  $region27: #{cab_forward.1} parent=0 // pred_check_branch
    %25 = sbr.rel (0) target = $region29
  $region28: #{cab_forward.1} parent=0 // pred_region
    _
  $region29: #{cab_forward.1} parent=0 // pred_fallthru
    _
  %v26 = vld [vmem:[%s2] sm:$0xff]
  %v27 = vld [vmem:[%s0] sm:$0xf]
  %v28 = vld [vmem:[%s3] sm:$0xff]
  %v29 = vld [vmem:[%s1] sm:$0xf]
  %vm30 = vcmask 31744
  %v32 = vsel %vm30, %v28, 0
  %vm34 = vcmask 1043456
  %v36 = vsel %vm34, %v29, 0
  %38 = vmatprep.subr.mxu0 0.0
  %39 = vmatpush1.msra.mxu0 0.0
  %40 = vmatprep.subr.mxu0 0.0
  %41 = vmatpush1.msra.mxu0 0.0
  %42 = vmatprep.subr.mxu0 0.0
  %43 = vmatpush1.msra.mxu0 0.0
  %44 = vmatprep.subr.mxu0 0.0
  %45 = vmatpush1.msra.mxu0 0.0
  %46 = vmatprep.subr.mxu0 0.0
  %47 = vmatpush1.msra.mxu0 0.0
  %48 = vmatprep.subr.mxu0 0.0
  %49 = vmatpush1.msra.mxu0 0.0
  %50 = vmatprep.subr.mxu0 0.0
  %51 = vmatpush1.msra.mxu0 0.0
  %52 = vmatprep.subr.mxu0 0.0
  %53 = vmatpush1.msra.mxu0 0.0
  %54 = vmatprep.subr.mxu0 0.0
  %55 = vmatpush1.msra.mxu0 0.0
  %56 = vmatprep.subr.mxu0 0.0
  %57 = vmatpush1.msra.mxu0 0.0
  %58 = vmatprep.subr.mxu0 0.0
  %59 = vmatpush1.msra.mxu0 0.0
  %60 = vmatprep.subr.mxu0 0.0
  %61 = vmatpush1.msra.mxu0 0.0
  %62 = vmatprep.subr.mxu0 0.0
  %63 = vmatpush1.msra.mxu0 0.0
  %64 = vmatprep.subr.mxu0 0.0
  %65 = vmatpush1.msra.mxu0 0.0
  %66 = vmatprep.subr.mxu0 0.0
  %67 = vmatpush1.msra.mxu0 0.0
  %68 = vmatprep.subr.mxu0 0.0
  %69 = vmatpush1.msra.mxu0 %v36
  %70 = vmatprep.subr.mxu0 0.0
  %71 = vmatpush2.msra.mxu0 0.0
  %72 = vmatprep.subr.mxu0 0.0
  %73 = vmatpush2.msra.mxu0 0.0
  %74 = vmatprep.subr.mxu0 0.0
  %75 = vmatpush2.msra.mxu0 0.0
  %76 = vmatprep.subr.mxu0 0.0
  %77 = vmatpush2.msra.mxu0 0.0
  %78 = vmatprep.subr.mxu0 0.0
  %79 = vmatpush2.msra.mxu0 0.0
  %80 = vmatprep.subr.mxu0 0.0
  %81 = vmatpush2.msra.mxu0 0.0
  %82 = vmatprep.subr.mxu0 0.0
  %83 = vmatpush2.msra.mxu0 0.0
  %84 = vmatprep.subr.mxu0 0.0
  %85 = vmatpush2.msra.mxu0 0.0
  %86 = vmatprep.subr.mxu0 0.0
  %87 = vmatpush2.msra.mxu0 0.0
  %88 = vmatprep.subr.mxu0 0.0
  %89 = vmatpush2.msra.mxu0 0.0
  %90 = vmatprep.subr.mxu0 0.0
  %91 = vmatpush2.msra.mxu0 0.0
  %92 = vmatprep.subr.mxu0 0.0
  %93 = vmatpush2.msra.mxu0 0.0
  %94 = vmatprep.subr.mxu0 0.0
  %95 = vmatpush2.msra.mxu0 0.0
  %96 = vmatprep.subr.mxu0 0.0
  %97 = vmatpush2.msra.mxu0 0.0
  %98 = vmatprep.subr.mxu0 0.0
  %99 = vmatpush2.msra.mxu0 0.0
  %100 = vmatprep.subr.mxu0 0.0
  %101 = vmatpush2.msra.mxu0 0.0
  %102 = vmatprep.mubr.f32.mxu0 0.0
  %103 = vmatmul.mubr.f32.gmra.mxu0 %v32
  %v104 = vpop.f32.mrf.mxu0
  %v105 = vadd.f32 0.0, %v104
  %v106 = vpop.f32.mrf.mxu0
  %107 = vdwg.mxu0
  %v109 = vsel %vm30, %v26, 0
  %v112 = vsel %vm34, %v27, 0
  %114 = vmatprep.subr.mxu0 0.0
  %115 = vmatpush1.msra.mxu0 0.0
  %116 = vmatprep.subr.mxu0 0.0
  %117 = vmatpush1.msra.mxu0 0.0
  %118 = vmatprep.subr.mxu0 0.0
  %119 = vmatpush1.msra.mxu0 0.0
  %120 = vmatprep.subr.mxu0 0.0
  %121 = vmatpush1.msra.mxu0 0.0
  %122 = vmatprep.subr.mxu0 0.0
  %123 = vmatpush1.msra.mxu0 0.0
  %124 = vmatprep.subr.mxu0 0.0
  %125 = vmatpush1.msra.mxu0 0.0
  %126 = vmatprep.subr.mxu0 0.0
  %127 = vmatpush1.msra.mxu0 0.0
  %128 = vmatprep.subr.mxu0 0.0
  %129 = vmatpush1.msra.mxu0 0.0
  %130 = vmatprep.subr.mxu0 0.0
  %131 = vmatpush1.msra.mxu0 0.0
  %132 = vmatprep.subr.mxu0 0.0
  %133 = vmatpush1.msra.mxu0 0.0
  %134 = vmatprep.subr.mxu0 0.0
  %135 = vmatpush1.msra.mxu0 0.0
  %136 = vmatprep.subr.mxu0 0.0
  %137 = vmatpush1.msra.mxu0 0.0
  %138 = vmatprep.subr.mxu0 0.0
  %139 = vmatpush1.msra.mxu0 0.0
  %140 = vmatprep.subr.mxu0 0.0
  %141 = vmatpush1.msra.mxu0 0.0
  %142 = vmatprep.subr.mxu0 0.0
  %143 = vmatpush1.msra.mxu0 0.0
  %144 = vmatprep.subr.mxu0 0.0
  %145 = vmatpush1.msra.mxu0 %v112
  %146 = vmatprep.subr.mxu0 0.0
  %147 = vmatpush2.msra.mxu0 0.0
  %148 = vmatprep.subr.mxu0 0.0
  %149 = vmatpush2.msra.mxu0 0.0
  %150 = vmatprep.subr.mxu0 0.0
  %151 = vmatpush2.msra.mxu0 0.0
  %152 = vmatprep.subr.mxu0 0.0
  %153 = vmatpush2.msra.mxu0 0.0
  %154 = vmatprep.subr.mxu0 0.0
  %155 = vmatpush2.msra.mxu0 0.0
  %156 = vmatprep.subr.mxu0 0.0
  %157 = vmatpush2.msra.mxu0 0.0
  %158 = vmatprep.subr.mxu0 0.0
  %159 = vmatpush2.msra.mxu0 0.0
  %160 = vmatprep.subr.mxu0 0.0
  %161 = vmatpush2.msra.mxu0 0.0
  %162 = vmatprep.subr.mxu0 0.0
  %163 = vmatpush2.msra.mxu0 0.0
  %164 = vmatprep.subr.mxu0 0.0
  %165 = vmatpush2.msra.mxu0 0.0
  %166 = vmatprep.subr.mxu0 0.0
  %167 = vmatpush2.msra.mxu0 0.0
  %168 = vmatprep.subr.mxu0 0.0
  %169 = vmatpush2.msra.mxu0 0.0
  %170 = vmatprep.subr.mxu0 0.0
  %171 = vmatpush2.msra.mxu0 0.0
  %172 = vmatprep.subr.mxu0 0.0
  %173 = vmatpush2.msra.mxu0 0.0
  %174 = vmatprep.subr.mxu0 0.0
  %175 = vmatpush2.msra.mxu0 0.0
  %176 = vmatprep.subr.mxu0 0.0
  %177 = vmatpush2.msra.mxu0 0.0
  %178 = vmatprep.mubr.f32.mxu0 0.0
  %179 = vmatmul.mubr.f32.gmra.mxu0 %v109
  %v180 = vpop.f32.mrf.mxu0
  %v181 = vadd.f32 %v105, %v180
  %v182 = vpop.f32.mrf.mxu0
  %183 = vdwg.mxu0
  %v184 = vld [vmem:[%s4] sm:$0xff]
  %186 = vset.pattern.permute.xlu0 0
  %187 = vperm.xlu0 %186, %v184
  %v188 = vpop.permute.xlu0 %187
  %v190 = vadd.f32 %v181, %v188
  %v191 = vmax.f32 %v190, 0.0
  %v192 = vld [vmem:[%s5] sm:$0xff]
  %v193 = vld [vmem:[%s6] sm:$0xff]
  %195 = vset.pattern.permute.xlu0 0
  %196 = vperm.xlu0 %195, %v193
  %v197 = vpop.permute.xlu0 %196
  %vm199 = vcmask 64512
  %v201 = vsel %vm199, %v192, 0
  %203 = vmatprep.subr.mxu0 0.0
  %204 = vmatpush1.msra.mxu0 0.0
  %205 = vmatprep.subr.mxu0 0.0
  %206 = vmatpush1.msra.mxu0 0.0
  %207 = vmatprep.subr.mxu0 0.0
  %208 = vmatpush1.msra.mxu0 0.0
  %209 = vmatprep.subr.mxu0 0.0
  %210 = vmatpush1.msra.mxu0 0.0
  %211 = vmatprep.subr.mxu0 0.0
  %212 = vmatpush1.msra.mxu0 0.0
  %213 = vmatprep.subr.mxu0 0.0
  %214 = vmatpush1.msra.mxu0 0.0
  %215 = vmatprep.subr.mxu0 0.0
  %216 = vmatpush1.msra.mxu0 0.0
  %217 = vmatprep.subr.mxu0 0.0
  %218 = vmatpush1.msra.mxu0 0.0
  %219 = vmatprep.subr.mxu0 0.0
  %220 = vmatpush1.msra.mxu0 0.0
  %221 = vmatprep.subr.mxu0 0.0
  %222 = vmatpush1.msra.mxu0 0.0
  %223 = vmatprep.subr.mxu0 0.0
  %224 = vmatpush1.msra.mxu0 0.0
  %225 = vmatprep.subr.mxu0 0.0
  %226 = vmatpush1.msra.mxu0 0.0
  %227 = vmatprep.subr.mxu0 0.0
  %228 = vmatpush1.msra.mxu0 0.0
  %229 = vmatprep.subr.mxu0 0.0
  %230 = vmatpush1.msra.mxu0 0.0
  %231 = vmatprep.subr.mxu0 0.0
  %232 = vmatpush1.msra.mxu0 0.0
  %233 = vmatprep.subr.mxu0 0.0
  %234 = vmatpush1.msra.mxu0 %v191
  %235 = vmatprep.subr.mxu0 0.0
  %236 = vmatpush2.msra.mxu0 0.0
  %237 = vmatprep.subr.mxu0 0.0
  %238 = vmatpush2.msra.mxu0 0.0
  %239 = vmatprep.subr.mxu0 0.0
  %240 = vmatpush2.msra.mxu0 0.0
  %241 = vmatprep.subr.mxu0 0.0
  %242 = vmatpush2.msra.mxu0 0.0
  %243 = vmatprep.subr.mxu0 0.0
  %244 = vmatpush2.msra.mxu0 0.0
  %245 = vmatprep.subr.mxu0 0.0
  %246 = vmatpush2.msra.mxu0 0.0
  %247 = vmatprep.subr.mxu0 0.0
  %248 = vmatpush2.msra.mxu0 0.0
  %249 = vmatprep.subr.mxu0 0.0
  %250 = vmatpush2.msra.mxu0 0.0
  %251 = vmatprep.subr.mxu0 0.0
  %252 = vmatpush2.msra.mxu0 0.0
  %253 = vmatprep.subr.mxu0 0.0
  %254 = vmatpush2.msra.mxu0 0.0
  %255 = vmatprep.subr.mxu0 0.0
  %256 = vmatpush2.msra.mxu0 0.0
  %257 = vmatprep.subr.mxu0 0.0
  %258 = vmatpush2.msra.mxu0 0.0
  %259 = vmatprep.subr.mxu0 0.0
  %260 = vmatpush2.msra.mxu0 0.0
  %261 = vmatprep.subr.mxu0 0.0
  %262 = vmatpush2.msra.mxu0 0.0
  %263 = vmatprep.subr.mxu0 0.0
  %264 = vmatpush2.msra.mxu0 0.0
  %265 = vmatprep.subr.mxu0 0.0
  %266 = vmatpush2.msra.mxu0 0.0
  %267 = vmatprep.mubr.f32.mxu0 0.0
  %268 = vmatmul.mubr.f32.gmra.mxu0 %v201
  %v269 = vpop.f32.mrf.mxu0
  %v270 = vadd.f32 %v197, %v269
  %v271 = vpop.f32.mrf.mxu0
  %272 = vdwg.mxu0
  %v273 = vxor.u32 %v270, 2147483648
  %v274 = vmul.f32 %v273, 1.442695
  %v275 = vpow.pop %v274
  %v276 = vadd.f32 %v275, 1.0
  %v277 = vrcp.pop %v276
  %v278 = vmul.f32 1.0, %v277
  %vm279 = vcmask 261120
  %280 = vst.msk [vmem:[%s7] sm:$0xff] %vm279, %v278
  // Predicated region
  $region30: #{cab_forward.1} parent=0 // pred_check
    _
  $region31: #{cab_forward.1} parent=0 // pred_check_branch
    %282 = sbr.rel (0) target = $region33
  $region32: #{cab_forward.1} parent=0 // pred_region
    _
  $region33: #{cab_forward.1} parent=0 // pred_fallthru
    _
  // Predicated region
  $region34: #{cab_forward.1} parent=0 // pred_check
    _
  $region35: #{cab_forward.1} parent=0 // pred_check_branch
    %284 = sbr.rel (0) target = $region37
  $region36: #{cab_forward.1} parent=0 // pred_region
    _
  $region37: #{cab_forward.1} parent=0 // pred_fallthru
    _

</llo_original>
